<compile_context>
chip_gen: v6e
topology: v6e:2x2x1
jax: 0.10.0
libtpu: 0.0.40
codegen_flags: <defaults>
</compile_context>

<pallas_src>
import functools
import math

import jax
import jax.numpy as jnp
from jax import lax
from jax.experimental import pallas as pl
from jax.experimental.pallas import tpu as pltpu


def _self_attention_kernel(x_ref, w_ref, o_ref, *, approx_reciprocal):
    # x_ref: (Bb, S, D) tile of the batch
    # w_ref: (3D, D) fused [Wq*scale; Wk; Wv] in nn.Linear (out, in) layout
    # o_ref: (Bb, S, D) output tile
    Bb, S, D = x_ref.shape

    x = x_ref[...]                         # native dtype (no up-cast)
    x2 = x.reshape(Bb * S, D)
    in_dtype = x.dtype

    def proj(w_rows):
        # x2 @ w_rows^T: contract x's feature dim against the stored (out, in)
        # layout directly — no transpose copy of the weight.
        return lax.dot_general(
            x2, w_rows,
            dimension_numbers=(((1,), (1,)), ((), ())),
            preferred_element_type=jnp.float32,
        )

    if D % 128 == 0:
        # Fused projection: one MXU pass with a 3x wider N dim; slicing the
        # result at multiples of 128 lanes is free (lane-aligned).
        qkv = proj(w_ref[...])             # (Bb*S, 3D) f32 accum
        q = qkv[:, :D]                     # already carries the 1/sqrt(D) scale
        k = qkv[:, D:2 * D]
        v = qkv[:, 2 * D:]
    else:
        # D not lane-aligned (e.g. D=32): slicing the fused result would cut
        # inside a 128-lane vreg and force XLU relayouts of the whole tensor.
        # Instead take static, sublane-aligned row-slices of the weight ref
        # (zero-cost) and run three matmuls.
        q = proj(w_ref[0:D, :])
        k = proj(w_ref[D:2 * D, :])
        v = proj(w_ref[2 * D:3 * D, :])

    q = q.astype(in_dtype).reshape(Bb, S, D)
    k = k.astype(in_dtype).reshape(Bb, S, D)
    v = v.astype(in_dtype).reshape(Bb, S, D)

    # scores = Q @ K^T (batched), contracting last dims directly — no explicit
    # transpose / XLU copy of K. (Bb, S, S), f32 accumulation.
    scores = lax.dot_general(
        q, k,
        dimension_numbers=(((2,), (2,)), ((0,), (0,))),
        preferred_element_type=jnp.float32,
    )

    # Numerically-stable softmax over the last dim (dim=2 in the PyTorch code).
    # Normalization is deferred until after the PV matmul: the elementwise
    # scaling then touches a (Bb,S,D) tensor instead of (Bb,S,S).
    m = jnp.max(scores, axis=-1, keepdims=True)
    p = jnp.exp(scores - m)                       # un-normalized probs, f32
    denom = jnp.sum(p, axis=-1, keepdims=True)    # (Bb, S, 1) f32

    # (un-normalized attention) @ V, batched, f32 accumulation.
    out = lax.dot_general(
        p.astype(v.dtype), v,
        dimension_numbers=(((2,), (1,)), ((0,), (0,))),
        preferred_element_type=jnp.float32,
    )                                             # (Bb, S, D)

    if approx_reciprocal:
        # EUP-slot reciprocal (~free); ~2^-8..2^-12 rel err — inference only.
        out = out * pl.reciprocal(denom, approx=True)
    else:
        out = out / denom                          # exact normalization
    o_ref[...] = out.astype(o_ref.dtype)


def _choose_block_b(B, S, D, in_itemsize, vmem_budget_bytes, weight_bytes):
    """Pick a batch tile: MXU-fill target, VMEM budget cap, >=2 grid steps."""
    # Rough per-batch-element VMEM footprint: double-buffered in/out tiles plus
    # the f32 intermediates the kernel materializes.
    bytes_per_b = (
        4 * S * D * in_itemsize          # in + out tiles, double buffered
        + 3 * S * D * 4                  # q, k, v (f32 accumulators)
        + 2 * S * S * 4                  # scores + p (f32)
        + S * D * 4                      # PV accumulator (f32)
    )
    budget = max(vmem_budget_bytes - weight_bytes, bytes_per_b)
    max_by_vmem = max(1, budget // bytes_per_b)

    # Target >= 256 rows per MXU push (v6e/v7x MXUs are 2x256^2; on v5e's
    # 4x128^2 this slightly over-targets, which is harmless).
    target = max(1, -(-256 // S))
    target = min(target, int(max_by_vmem), B)
    # Keep at least 2 grid steps when possible so the "parallel" axis can be
    # sharded across v7x's two TensorCores (and the pipeline has overlap).
    if B >= 2:
        target = min(target, B // 2)
    target = max(target, 1)
    for cand in range(target, 0, -1):
        if B % cand == 0:
            return cand
    return 1


def self_attention(x, wq, wk, wv, *, block_b=None, cast_to_bf16=False,
                   approx_reciprocal=False, single_buffer_weight=False):
    """x: (B, S, D); wq/wk/wv: (D, D) in PyTorch nn.Linear layout (out, in)."""
    B, S, D = x.shape
    out_dtype = x.dtype

    scale = jnp.asarray(1.0 / math.sqrt(float(D)), dtype=wq.dtype)
    # Fuse the three projection weights once, folding the attention scale into
    # the Q rows. Layout stays (out, in) so the kernel needs no transpose copy.
    w_qkv = jnp.concatenate([wq * scale, wk, wv], axis=0)           # (3D, D)

    if cast_to_bf16:
        # f32xf32 matmuls decompose into multiple MXU passes on all three
        # generations; bf16 operands (with f32 accumulation inside the kernel)
        # give ~3x MXU throughput when full f32 is not required.
        x = x.astype(jnp.bfloat16)
        w_qkv = w_qkv.astype(jnp.bfloat16)

    vmem_budget = 32 * 1024 * 1024   # conservative across v5e/v6e/v7x
    n_weight_bufs = 1 if single_buffer_weight else 2
    weight_bytes = int(w_qkv.size) * w_qkv.dtype.itemsize * n_weight_bufs
    if block_b is None:
        block_b = _choose_block_b(B, S, D, x.dtype.itemsize, vmem_budget,
                                  weight_bytes)
    assert B % block_b == 0

    w_spec_kwargs = {}
    if single_buffer_weight:
        # The weight index_map is constant so re-DMA is already skipped; this
        # drops the second (unused) buffer, saving 3*D*D*itemsize of VMEM
        # (meaningful at D ~ 1024, irrelevant at the test shape).
        w_spec_kwargs["pipeline_mode"] = pl.Buffered(1)

    grid_spec = pltpu.PrefetchScalarGridSpec(
        num_scalar_prefetch=0,
        grid=(B // block_b,),
        in_specs=[
            pl.BlockSpec((block_b, S, D), lambda b: (b, 0, 0)),
            pl.BlockSpec((3 * D, D), lambda b: (0, 0), **w_spec_kwargs),
        ],
        out_specs=pl.BlockSpec((block_b, S, D), lambda b: (b, 0, 0)),
    )

    kernel = functools.partial(_self_attention_kernel,
                               approx_reciprocal=approx_reciprocal)

    # TODO(synk): for long sequences (S >= ~1k on v7x's 64 MiB VMEM, ~2k on
    # v5e/v6e) the materialized (S, S) scores no longer fit; switch to a
    # KV-tiled online-softmax (flash-style) variant there.
    # Note: with D < 128 (e.g. the D=32 test) output stores are lane-masked and
    # tiles are lane-padded — pack features so the last dim is >=128 in real
    # deployments.
    return pl.pallas_call(
        kernel,
        out_shape=jax.ShapeDtypeStruct((B, S, D), out_dtype),
        grid_spec=grid_spec,
        compiler_params=pltpu.CompilerParams(
            dimension_semantics=("parallel",),
            # Explicit scoped-VMEM limit: above the 16/32 MiB defaults, below
            # v7x's 64 MiB physical VMEM, well below v5e/v6e's 128 MiB.
            vmem_limit_bytes=48 * 1024 * 1024,
        ),
    )(x, w_qkv)


def self_attention_ref(x, wq, wk, wv):
    """Pure-JAX reference mirroring the PyTorch forward (dense, non-packed path).

    Uses Precision.HIGHEST so the reference itself is exact f32 on TPU (the
    default matmul precision would otherwise add ~1e-3 noise to the baseline).
    """
    hp = jax.lax.Precision.HIGHEST
    q = jnp.einsum("bsd,ed->bse", x, wq, precision=hp)
    k = jnp.einsum("bsd,ed->bse", x, wk, precision=hp)
    v = jnp.einsum("bsd,ed->bse", x, wv, precision=hp)
    scores = jnp.einsum("bqd,bkd->bqk", q, k, precision=hp) / math.sqrt(x.shape[-1])
    attn = jax.nn.softmax(scores, axis=2)
    return jnp.einsum("bqk,bkd->bqd", attn, v, precision=hp)


if __name__ == "__main__":
    # Small shapes consistent with the module: (batch, seq, feature), input_size = D.
    B, S, D = 2, 8, 32

    key = jax.random.PRNGKey(0)
    kx, kq, kk, kv = jax.random.split(key, 4)

    x = jax.random.normal(kx, (B, S, D), dtype=jnp.float32)

    # nn.Linear(input_size, input_size, bias=False) default init: U(-1/sqrt(in), 1/sqrt(in))
    bound = 1.0 / math.sqrt(D)
    wq = jax.random.uniform(kq, (D, D), minval=-bound, maxval=bound, dtype=jnp.float32)
    wk = jax.random.uniform(kk, (D, D), minval=-bound, maxval=bound, dtype=jnp.float32)
    wv = jax.random.uniform(kv, (D, D), minval=-bound, maxval=bound, dtype=jnp.float32)

    ref = self_attention_ref(x, wq, wk, wv)

    # Full-precision path (exact softmax normalization, native-dtype matmuls).
    out = jax.block_until_ready(self_attention(x, wq, wk, wv))
    assert out.shape == (B, S, D)
    assert jnp.allclose(out, ref, atol=1e-2, rtol=1e-2), "mismatch vs reference (f32 path)"

    # Fast path: bf16 MXU operands (f32 accumulation) + EUP approx reciprocal.
    out_fast = jax.block_until_ready(
        self_attention(x, wq, wk, wv, cast_to_bf16=True, approx_reciprocal=True))
    assert out_fast.shape == (B, S, D)
    assert jnp.allclose(out_fast, ref, atol=6e-2, rtol=6e-2), "mismatch vs reference (bf16 path)"

    # TODO(synk): PackedSequence / length-mask branch not implemented (dense input path only).
    print("KERNEL_OK")
</pallas_src>

<mosaic_0001>
module attributes {stable_mosaic.version = 11 : i64} {
  func.func @_self_attention_kernel(%arg0: i32, %arg1: memref<1x8x32xf32, #tpu.memory_space<vmem>>, %arg2: memref<96x32xf32, #tpu.memory_space<vmem>>, %arg3: memref<1x8x32xf32, #tpu.memory_space<vmem>>) attributes {dimension_semantics = [#tpu.dimension_semantics<parallel>], iteration_bounds = array<i64: 2>, scalar_prefetch = 0 : i64, scratch_operands = 0 : i64, tpu.core_type = #tpu.core_type<tc>, window_params = [{transform_indices = @transform_0, window_bounds = array<i64: 1, 8, 32>}, {pipeline_mode = #tpu.pipeline_mode<synchronous>, transform_indices = @transform_1, window_bounds = array<i64: 96, 32>}, {transform_indices = @transform_2, window_bounds = array<i64: 1, 8, 32>}]} {
    %c0 = arith.constant 0 : index
    %c0_0 = arith.constant 0 : index
    %c0_1 = arith.constant 0 : index
    %0 = vector.load %arg1[%c0, %c0_0, %c0_1] : memref<1x8x32xf32, #tpu.memory_space<vmem>>, vector<1x8x32xf32>
    %1 = vector.shape_cast %0 : vector<1x8x32xf32> to vector<8x32xf32>
    %c0_2 = arith.constant 0 : index
    %c0_3 = arith.constant 0 : index
    %2 = vector.load %arg2[%c0_2, %c0_3] : memref<96x32xf32, #tpu.memory_space<vmem>>, vector<32x32xf32>
    %cst = arith.constant dense<0.000000e+00> : vector<8x32xf32>
    %3 = tpu.matmul %1, %2, %cst {dimension_numbers = #tpu.dot_dimension_numbers<[1], [1], [0], [0], [0, 0, 1, 0], [], []>} : vector<8x32xf32>, vector<32x32xf32>, vector<8x32xf32> -> vector<8x32xf32>
    %c32 = arith.constant 32 : index
    %c0_4 = arith.constant 0 : index
    %4 = vector.load %arg2[%c32, %c0_4] : memref<96x32xf32, #tpu.memory_space<vmem>>, vector<32x32xf32>
    %cst_5 = arith.constant dense<0.000000e+00> : vector<8x32xf32>
    %5 = tpu.matmul %1, %4, %cst_5 {dimension_numbers = #tpu.dot_dimension_numbers<[1], [1], [0], [0], [0, 0, 1, 0], [], []>} : vector<8x32xf32>, vector<32x32xf32>, vector<8x32xf32> -> vector<8x32xf32>
    %c64 = arith.constant 64 : index
    %c0_6 = arith.constant 0 : index
    %6 = vector.load %arg2[%c64, %c0_6] : memref<96x32xf32, #tpu.memory_space<vmem>>, vector<32x32xf32>
    %cst_7 = arith.constant dense<0.000000e+00> : vector<8x32xf32>
    %7 = tpu.matmul %1, %6, %cst_7 {dimension_numbers = #tpu.dot_dimension_numbers<[1], [1], [0], [0], [0, 0, 1, 0], [], []>} : vector<8x32xf32>, vector<32x32xf32>, vector<8x32xf32> -> vector<8x32xf32>
    %8 = vector.shape_cast %3 : vector<8x32xf32> to vector<1x8x32xf32>
    %9 = vector.shape_cast %5 : vector<8x32xf32> to vector<1x8x32xf32>
    %10 = vector.shape_cast %7 : vector<8x32xf32> to vector<1x8x32xf32>
    %cst_8 = arith.constant dense<0.000000e+00> : vector<1x8x8xf32>
    %11 = tpu.matmul %8, %9, %cst_8 {dimension_numbers = #tpu.dot_dimension_numbers<[2], [2], [1], [1], [0, 0, 0, 1, 1, 1], [0], [0]>} : vector<1x8x32xf32>, vector<1x8x32xf32>, vector<1x8x8xf32> -> vector<1x8x8xf32>
    %cst_9 = arith.constant dense<0xFF800000> : vector<1x8xf32>
    %12 = vector.multi_reduction <maximumf>, %11, %cst_9 [2] : vector<1x8x8xf32> to vector<1x8xf32>
    %13 = vector.shape_cast %12 : vector<1x8xf32> to vector<1x8x1xf32>
    %14 = vector.broadcast %13 : vector<1x8x1xf32> to vector<1x8x8xf32>
    %15 = arith.subf %11, %14 : vector<1x8x8xf32>
    %16 = math.exp %15 : vector<1x8x8xf32>
    %cst_10 = arith.constant dense<0.000000e+00> : vector<1x8xf32>
    %17 = vector.multi_reduction <add>, %16, %cst_10 [2] : vector<1x8x8xf32> to vector<1x8xf32>
    %18 = vector.shape_cast %17 : vector<1x8xf32> to vector<1x8x1xf32>
    %cst_11 = arith.constant dense<0.000000e+00> : vector<1x8x32xf32>
    %19 = tpu.matmul %16, %10, %cst_11 {dimension_numbers = #tpu.dot_dimension_numbers<[2], [1], [1], [2], [0, 0, 0, 1, 1, 2], [0], [0]>} : vector<1x8x8xf32>, vector<1x8x32xf32>, vector<1x8x32xf32> -> vector<1x8x32xf32>
    %20 = vector.broadcast %18 : vector<1x8x1xf32> to vector<1x8x32xf32>
    %21 = arith.divf %19, %20 : vector<1x8x32xf32>
    %c0_12 = arith.constant 0 : index
    %c0_13 = arith.constant 0 : index
    %c0_14 = arith.constant 0 : index
    %22 = vector.load %arg3[%c0_12, %c0_13, %c0_14] : memref<1x8x32xf32, #tpu.memory_space<vmem>>, vector<1x8x32xf32>
    tpu.vector_store %arg3[%c0_12, %c0_13, %c0_14], %21 {strides = array<i32>} : memref<1x8x32xf32, #tpu.memory_space<vmem>>, vector<1x8x32xf32>,
    return
  }
  func.func @transform_0(%arg0: i32) -> (i32, i32, i32) {
    %c0_i32 = arith.constant 0 : i32
    %c0_i32_0 = arith.constant 0 : i32
    %c0_i32_1 = arith.constant 0 : i32
    return %arg0, %c0_i32, %c0_i32_0 : i32, i32, i32
  }
  func.func @transform_1(%arg0: i32) -> (i32, i32) {
    %c0_i32 = arith.constant 0 : i32
    %c0_i32_0 = arith.constant 0 : i32
    %c0_i32_1 = arith.constant 0 : i32
    return %c0_i32, %c0_i32_0 : i32, i32
  }
  func.func @transform_2(%arg0: i32) -> (i32, i32, i32) {
    %c0_i32 = arith.constant 0 : i32
    %c0_i32_0 = arith.constant 0 : i32
    %c0_i32_1 = arith.constant 0 : i32
    return %arg0, %c0_i32, %c0_i32_0 : i32, i32, i32
  }
}

</mosaic_0001>

<llo_original>
// kernel: tpu_custom_call.1
$region0: #{tpu_custom_call.1}
  #allocation0 [shape = 'u32[]', space=smem, size = 0x4, offset = 0x4, fixed_abs, tag = 'smem constant byte address 0x4 - core index']
  #allocation1 [shape = 'u32[144,128]{1,0:T(1,128)}', space=vmem, size = 0x12000, scoped, tag = 'internal scratch']
  %s0 = inlined_call_operand.vmem [shape: f32[2,8,32], index: 0, kind: input, shape index: {}]
  %s1 = inlined_call_operand.vmem [shape: f32[96,32], index: 1, kind: input, shape index: {}]
  %s2 = inlined_call_operand.hbm [shape: f32[2,8,32], index: 2, kind: output, shape index: {}]
  %s3 = sld [smem:[#allocation0]]
  $region41: #{tpu_custom_call.1} parent=0
    _
  %s5 = ssub.s32 1, %s3
  %s6 = scalar_select 0, %s5, %s3
  $region1: #{tpu_custom_call.1} parent=0
    #allocation2 [shape = 'u8[8192]{0}', space=vmem, size = 0x2000, scoped, tag = 'output window, operand 0']
    #allocation3 [shape = 's32[2]{0}', space=sflag, size = 0x8, scoped, tag = 'scoped memory for tpu_custom_call.1']
    %7 = vsyncpa [#allocation3], 0
    %s8 = scalar_lea.sflag [#allocation3], 1
    %9 = vsyncpa %s8, 0
    loop: start=0, step=1, limit=4
    $region2: #{tpu_custom_call.1} parent=1 // loop_pre_header
      _
    $region3: #{tpu_custom_call.1} parent=1 // loop_header
      %s11 = sphi 0, %s15
      %p12 = scmp.ge.s32.totalorder %s11, 4
      %s21 = sphi 0, %s23
      %s24 = sphi 0, %s21
      %s25 = sphi 0, %s24
      %s41 = sphi 0, %s25
      %s45 = sphi 0, %s45
      %s47 = sphi 0, %s45
      %s48 = sphi 0, %s47
      %s62 = sphi 0, %s48
      %s68 = sphi 0, %s70
      %s71 = sphi 0, %s68
      %s72 = sphi 0, %s71
      %s88 = sphi 0, %s72
    $region4: #{tpu_custom_call.1} parent=1 // loop_header_branch
      %14 = sbr.rel (%p12) target = $region8
    $region5: #{tpu_custom_call.1} parent=1 // loop_body
      %s16 = ssub.s32 %s11, 1
      %s17 = ssub.s32 %s11, 2
      %s18 = sadd.s32 %s11, 1
      %s19 = ssub.s32 %s11, %s18
      %p20 = scmp.eq.s32.totalorder %s19, 0
      %s22 = sadd.s32 %s21, 1
      %s23 = scalar_select %p20, %s21, %s22
      %p26 = pneg %p20
      %p27 = scmp.eq.s32.totalorder %s11, 1
      %p28 = por %p26, %p27
      %p29 = scmp.ne.s32.totalorder %s21, %s24
      %p30 = scmp.eq.s32.totalorder %s11, 0
      %p31 = por %p29, %p30
      %p32 = scmp.ne.s32.totalorder %s21, %s24
      %p33 = scmp.eq.s32.totalorder %s16, 1
      %p34 = por %p32, %p33
      %p35 = scmp.ne.s32.totalorder %s24, %s25
      %p36 = scmp.eq.s32.totalorder %s16, 0
      %p37 = por %p35, %p36
      %p38 = scmp.ne.s32.totalorder %s24, %s25
      %p39 = scmp.eq.s32.totalorder %s17, 1
      %p40 = por %p38, %p39
      %p42 = scmp.ne.s32.totalorder %s25, %s41
      %p43 = scmp.eq.s32.totalorder %s17, 0
      %p44 = por %p42, %p43
      %s46 = sadd.s32 %s45, 1
      %p49 = scmp.eq.s32.totalorder %s11, 1
      %p50 = scmp.ne.s32.totalorder %s45, %s47
      %p51 = scmp.eq.s32.totalorder %s11, 0
      %p52 = por %p50, %p51
      %p53 = scmp.ne.s32.totalorder %s45, %s47
      %p54 = scmp.eq.s32.totalorder %s16, 1
      %p55 = por %p53, %p54
      %p56 = scmp.ne.s32.totalorder %s47, %s48
      %p57 = scmp.eq.s32.totalorder %s16, 0
      %p58 = por %p56, %p57
      %p59 = scmp.ne.s32.totalorder %s47, %s48
      %p60 = scmp.eq.s32.totalorder %s17, 1
      %p61 = por %p59, %p60
      %p63 = scmp.ne.s32.totalorder %s48, %s62
      %p64 = scmp.eq.s32.totalorder %s17, 0
      %p65 = por %p63, %p64
      %s66 = ssub.s32 %s11, %s18
      %p67 = scmp.eq.s32.totalorder %s66, 0
      %s69 = sadd.s32 %s68, 1
      %s70 = scalar_select %p67, %s68, %s69
      %p73 = pneg %p67
      %p74 = scmp.eq.s32.totalorder %s11, 1
      %p75 = por %p73, %p74
      %p76 = scmp.ne.s32.totalorder %s68, %s71
      %p77 = scmp.eq.s32.totalorder %s11, 0
      %p78 = por %p76, %p77
      %p79 = scmp.ne.s32.totalorder %s68, %s71
      %p80 = scmp.eq.s32.totalorder %s16, 1
      %p81 = por %p79, %p80
      %p82 = scmp.ne.s32.totalorder %s71, %s72
      %p83 = scmp.eq.s32.totalorder %s16, 0
      %p84 = por %p82, %p83
      %p85 = scmp.ne.s32.totalorder %s71, %s72
      %p86 = scmp.eq.s32.totalorder %s17, 1
      %p87 = por %p85, %p86
      %p89 = scmp.ne.s32.totalorder %s72, %s88
      %p90 = scmp.eq.s32.totalorder %s17, 0
      %p91 = por %p89, %p90
      %p92 = scmp.le.s32.totalorder 1, %s11
      %p93 = scmp.lt.s32.totalorder %s11, 3
      %p94 = pnand %p92, %p93
      %p95 = pneg %p94
      // Predicated region
      $region9: #{tpu_custom_call.1} parent=5 // pred_check
        _
      $region10: #{tpu_custom_call.1} parent=5 // pred_check_branch
        %97 = sbr.rel (%p94) target = $region12
      $region11: #{tpu_custom_call.1} parent=5 // pred_region
        %s98 = ssub.s32 %s11, 1
        // Predicated region
        $region13: #{tpu_custom_call.1} parent=11 // pred_check
          %p99 = pneg %p58
        $region14: #{tpu_custom_call.1} parent=11 // pred_check_branch
          %101 = sbr.rel (%p99) target = $region16
        $region15: #{tpu_custom_call.1} parent=11 // pred_region
          _
        $region16: #{tpu_custom_call.1} parent=11 // pred_fallthru
          _
      $region12: #{tpu_custom_call.1} parent=5 // pred_fallthru
        _
      %p102 = scmp.lt.s32.totalorder %s11, 2
      // Predicated region
      $region17: #{tpu_custom_call.1} parent=5 // pred_check
        %p103 = pneg %p102
      $region18: #{tpu_custom_call.1} parent=5 // pred_check_branch
        %105 = sbr.rel (%p103) target = $region20
      $region19: #{tpu_custom_call.1} parent=5 // pred_region
        // Predicated region
        $region21: #{tpu_custom_call.1} parent=19 // pred_check
          %p106 = pneg %p31
        $region22: #{tpu_custom_call.1} parent=19 // pred_check_branch
          %108 = sbr.rel (%p106) target = $region24
        $region23: #{tpu_custom_call.1} parent=19 // pred_region
          %p109 = scmp.lt.s32.totalorder %s11, 1
          %s110 = scalar_select %p109, %s11, 1
          %s111 = smul.addr %s110, 8
          %s112 = scalar_lea.vmem %s0, %s111
        $region24: #{tpu_custom_call.1} parent=19 // pred_fallthru
          _
      $region20: #{tpu_custom_call.1} parent=5 // pred_fallthru
        _
      %p113 = scmp.le.s32.totalorder 1, %s11
      %p114 = scmp.lt.s32.totalorder %s11, 3
      %p115 = pnand %p113, %p114
      %p116 = pneg %p115
      // Predicated region
      $region25: #{tpu_custom_call.1} parent=5 // pred_check
        _
      $region26: #{tpu_custom_call.1} parent=5 // pred_check_branch
        %118 = sbr.rel (%p115) target = $region28
      $region27: #{tpu_custom_call.1} parent=5 // pred_region
        %s119 = ssub.s32 %s11, 1
        %p120 = scmp.lt.s32.totalorder %s16, 1
        %s121 = scalar_select %p120, %s16, 1
        %s122 = smul.addr %s121, 8
        %s123 = scalar_lea.vmem %s0, %s122
        %p124 = pneg %p37
        %p125 = pneg %p34
        %p126 = pneg %p58
        %p127 = pneg %p55
        %p128 = pneg %p84
        %p129 = pneg %p81
        %s130 = sand.u32 %s71, 1
        %s131 = scalar_lea.sflag [#allocation3], %s130
        %s132 = sand.u32 %s71, 1
        %s133 = smul.addr %s132, 8
        %s134 = scalar_lea.vmem [#allocation2], %s133
        %p135 = scmp.lt.s32.totalorder %s16, 1
        %s136 = scalar_select %p135, %s16, 1
        %s137 = smul.addr %s136, 8
        %s138 = scalar_lea.vmem %s0, %s137
        %v139 = vld [vmem:[%s138] sm:$0xff]
        %v140 = vld [vmem:[%s1] sm:$0xff]
        %v141 = vld [vmem:[%s1 + $0x8] sm:$0xff]
        %v142 = vld [vmem:[%s1 + $0x10] sm:$0xff]
        %v143 = vld [vmem:[%s1 + $0x18] sm:$0xff]
        %vm144 = vcmask 261120
        %v146 = vsel %vm144, %v139, 0
        %v149 = vsel %vm144, %v140, 0
        %v152 = vsel %vm144, %v141, 0
        %v155 = vsel %vm144, %v142, 0
        %v158 = vsel %vm144, %v143, 0
        %160 = vmatprep.subr.mxu0 0.0
        %161 = vmatpush1.xpose.msra.mxu0 0.0
        %162 = vmatprep.subr.mxu0 0.0
        %163 = vmatpush1.xpose.msra.mxu0 0.0
        %164 = vmatprep.subr.mxu0 0.0
        %165 = vmatpush1.xpose.msra.mxu0 0.0
        %166 = vmatprep.subr.mxu0 0.0
        %167 = vmatpush1.xpose.msra.mxu0 0.0
        %168 = vmatprep.subr.mxu0 0.0
        %169 = vmatpush1.xpose.msra.mxu0 0.0
        %170 = vmatprep.subr.mxu0 0.0
        %171 = vmatpush1.xpose.msra.mxu0 0.0
        %172 = vmatprep.subr.mxu0 0.0
        %173 = vmatpush1.xpose.msra.mxu0 0.0
        %174 = vmatprep.subr.mxu0 0.0
        %175 = vmatpush1.xpose.msra.mxu0 0.0
        %176 = vmatprep.subr.mxu0 0.0
        %177 = vmatpush1.xpose.msra.mxu0 0.0
        %178 = vmatprep.subr.mxu0 0.0
        %179 = vmatpush1.xpose.msra.mxu0 0.0
        %180 = vmatprep.subr.mxu0 0.0
        %181 = vmatpush1.xpose.msra.mxu0 0.0
        %182 = vmatprep.subr.mxu0 0.0
        %183 = vmatpush1.xpose.msra.mxu0 0.0
        %184 = vmatprep.subr.mxu0 0.0
        %185 = vmatpush1.xpose.msra.mxu0 %v158
        %186 = vmatprep.subr.mxu0 0.0
        %187 = vmatpush1.xpose.msra.mxu0 %v155
        %188 = vmatprep.subr.mxu0 0.0
        %189 = vmatpush1.xpose.msra.mxu0 %v152
        %190 = vmatprep.subr.mxu0 0.0
        %191 = vmatpush1.xpose.msra.mxu0 %v149
        %192 = vmatprep.subr.mxu0 0.0
        %193 = vmatpush2.xpose.msra.mxu0 0.0
        %194 = vmatprep.subr.mxu0 0.0
        %195 = vmatpush2.xpose.msra.mxu0 0.0
        %196 = vmatprep.subr.mxu0 0.0
        %197 = vmatpush2.xpose.msra.mxu0 0.0
        %198 = vmatprep.subr.mxu0 0.0
        %199 = vmatpush2.xpose.msra.mxu0 0.0
        %200 = vmatprep.subr.mxu0 0.0
        %201 = vmatpush2.xpose.msra.mxu0 0.0
        %202 = vmatprep.subr.mxu0 0.0
        %203 = vmatpush2.xpose.msra.mxu0 0.0
        %204 = vmatprep.subr.mxu0 0.0
        %205 = vmatpush2.xpose.msra.mxu0 0.0
        %206 = vmatprep.subr.mxu0 0.0
        %207 = vmatpush2.xpose.msra.mxu0 0.0
        %208 = vmatprep.subr.mxu0 0.0
        %209 = vmatpush2.xpose.msra.mxu0 0.0
        %210 = vmatprep.subr.mxu0 0.0
        %211 = vmatpush2.xpose.msra.mxu0 0.0
        %212 = vmatprep.subr.mxu0 0.0
        %213 = vmatpush2.xpose.msra.mxu0 0.0
        %214 = vmatprep.subr.mxu0 0.0
        %215 = vmatpush2.xpose.msra.mxu0 0.0
        %216 = vmatprep.subr.mxu0 0.0
        %217 = vmatpush2.xpose.msra.mxu0 0.0
        %218 = vmatprep.subr.mxu0 0.0
        %219 = vmatpush2.xpose.msra.mxu0 0.0
        %220 = vmatprep.subr.mxu0 0.0
        %221 = vmatpush2.xpose.msra.mxu0 0.0
        %222 = vmatprep.subr.mxu0 0.0
        %223 = vmatpush2.xpose.msra.mxu0 0.0
        %224 = vmatprep.mubr.f32.mxu0 0.0
        %225 = vmatmul.mubr.f32.gmra.mxu0 %v146
        %v226 = vpop.f32.mrf.mxu0
        %v227 = vadd.f32 0.0, %v226
        %v228 = vpop.f32.mrf.mxu0
        %229 = vdwg.mxu0
        %v230 = vld [vmem:[%s1 + $0x20] sm:$0xff]
        %v231 = vld [vmem:[%s1 + $0x28] sm:$0xff]
        %v232 = vld [vmem:[%s1 + $0x30] sm:$0xff]
        %v233 = vld [vmem:[%s1 + $0x38] sm:$0xff]
        %v235 = vsel %vm144, %v230, 0
        %v238 = vsel %vm144, %v231, 0
        %v241 = vsel %vm144, %v232, 0
        %v244 = vsel %vm144, %v233, 0
        %246 = vmatprep.subr.mxu0 0.0
        %247 = vmatpush1.xpose.msra.mxu0 0.0
        %248 = vmatprep.subr.mxu0 0.0
        %249 = vmatpush1.xpose.msra.mxu0 0.0
        %250 = vmatprep.subr.mxu0 0.0
        %251 = vmatpush1.xpose.msra.mxu0 0.0
        %252 = vmatprep.subr.mxu0 0.0
        %253 = vmatpush1.xpose.msra.mxu0 0.0
        %254 = vmatprep.subr.mxu0 0.0
        %255 = vmatpush1.xpose.msra.mxu0 0.0
        %256 = vmatprep.subr.mxu0 0.0
        %257 = vmatpush1.xpose.msra.mxu0 0.0
        %258 = vmatprep.subr.mxu0 0.0
        %259 = vmatpush1.xpose.msra.mxu0 0.0
        %260 = vmatprep.subr.mxu0 0.0
        %261 = vmatpush1.xpose.msra.mxu0 0.0
        %262 = vmatprep.subr.mxu0 0.0
        %263 = vmatpush1.xpose.msra.mxu0 0.0
        %264 = vmatprep.subr.mxu0 0.0
        %265 = vmatpush1.xpose.msra.mxu0 0.0
        %266 = vmatprep.subr.mxu0 0.0
        %267 = vmatpush1.xpose.msra.mxu0 0.0
        %268 = vmatprep.subr.mxu0 0.0
        %269 = vmatpush1.xpose.msra.mxu0 0.0
        %270 = vmatprep.subr.mxu0 0.0
        %271 = vmatpush1.xpose.msra.mxu0 %v244
        %272 = vmatprep.subr.mxu0 0.0
        %273 = vmatpush1.xpose.msra.mxu0 %v241
        %274 = vmatprep.subr.mxu0 0.0
        %275 = vmatpush1.xpose.msra.mxu0 %v238
        %276 = vmatprep.subr.mxu0 0.0
        %277 = vmatpush1.xpose.msra.mxu0 %v235
        %278 = vmatprep.subr.mxu0 0.0
        %279 = vmatpush2.xpose.msra.mxu0 0.0
        %280 = vmatprep.subr.mxu0 0.0
        %281 = vmatpush2.xpose.msra.mxu0 0.0
        %282 = vmatprep.subr.mxu0 0.0
        %283 = vmatpush2.xpose.msra.mxu0 0.0
        %284 = vmatprep.subr.mxu0 0.0
        %285 = vmatpush2.xpose.msra.mxu0 0.0
        %286 = vmatprep.subr.mxu0 0.0
        %287 = vmatpush2.xpose.msra.mxu0 0.0
        %288 = vmatprep.subr.mxu0 0.0
        %289 = vmatpush2.xpose.msra.mxu0 0.0
        %290 = vmatprep.subr.mxu0 0.0
        %291 = vmatpush2.xpose.msra.mxu0 0.0
        %292 = vmatprep.subr.mxu0 0.0
        %293 = vmatpush2.xpose.msra.mxu0 0.0
        %294 = vmatprep.subr.mxu0 0.0
        %295 = vmatpush2.xpose.msra.mxu0 0.0
        %296 = vmatprep.subr.mxu0 0.0
        %297 = vmatpush2.xpose.msra.mxu0 0.0
        %298 = vmatprep.subr.mxu0 0.0
        %299 = vmatpush2.xpose.msra.mxu0 0.0
        %300 = vmatprep.subr.mxu0 0.0
        %301 = vmatpush2.xpose.msra.mxu0 0.0
        %302 = vmatprep.subr.mxu0 0.0
        %303 = vmatpush2.xpose.msra.mxu0 0.0
        %304 = vmatprep.subr.mxu0 0.0
        %305 = vmatpush2.xpose.msra.mxu0 0.0
        %306 = vmatprep.subr.mxu0 0.0
        %307 = vmatpush2.xpose.msra.mxu0 0.0
        %308 = vmatprep.subr.mxu0 0.0
        %309 = vmatpush2.xpose.msra.mxu0 0.0
        %310 = vmatprep.mubr.f32.mxu0 0.0
        %311 = vmatmul.mubr.f32.gmra.mxu0 %v146
        %v312 = vpop.f32.mrf.mxu0
        %v313 = vadd.f32 0.0, %v312
        %v314 = vpop.f32.mrf.mxu0
        %315 = vdwg.mxu0
        %v316 = vld [vmem:[%s1 + $0x40] sm:$0xff]
        %v317 = vld [vmem:[%s1 + $0x48] sm:$0xff]
        %v318 = vld [vmem:[%s1 + $0x50] sm:$0xff]
        %v319 = vld [vmem:[%s1 + $0x58] sm:$0xff]
        %v321 = vsel %vm144, %v316, 0
        %v324 = vsel %vm144, %v317, 0
        %v327 = vsel %vm144, %v318, 0
        %v330 = vsel %vm144, %v319, 0
        %332 = vmatprep.subr.mxu0 0.0
        %333 = vmatpush1.xpose.msra.mxu0 0.0
        %334 = vmatprep.subr.mxu0 0.0
        %335 = vmatpush1.xpose.msra.mxu0 0.0
        %336 = vmatprep.subr.mxu0 0.0
        %337 = vmatpush1.xpose.msra.mxu0 0.0
        %338 = vmatprep.subr.mxu0 0.0
        %339 = vmatpush1.xpose.msra.mxu0 0.0
        %340 = vmatprep.subr.mxu0 0.0
        %341 = vmatpush1.xpose.msra.mxu0 0.0
        %342 = vmatprep.subr.mxu0 0.0
        %343 = vmatpush1.xpose.msra.mxu0 0.0
        %344 = vmatprep.subr.mxu0 0.0
        %345 = vmatpush1.xpose.msra.mxu0 0.0
        %346 = vmatprep.subr.mxu0 0.0
        %347 = vmatpush1.xpose.msra.mxu0 0.0
        %348 = vmatprep.subr.mxu0 0.0
        %349 = vmatpush1.xpose.msra.mxu0 0.0
        %350 = vmatprep.subr.mxu0 0.0
        %351 = vmatpush1.xpose.msra.mxu0 0.0
        %352 = vmatprep.subr.mxu0 0.0
        %353 = vmatpush1.xpose.msra.mxu0 0.0
        %354 = vmatprep.subr.mxu0 0.0
        %355 = vmatpush1.xpose.msra.mxu0 0.0
        %356 = vmatprep.subr.mxu0 0.0
        %357 = vmatpush1.xpose.msra.mxu0 %v330
        %358 = vmatprep.subr.mxu0 0.0
        %359 = vmatpush1.xpose.msra.mxu0 %v327
        %360 = vmatprep.subr.mxu0 0.0
        %361 = vmatpush1.xpose.msra.mxu0 %v324
        %362 = vmatprep.subr.mxu0 0.0
        %363 = vmatpush1.xpose.msra.mxu0 %v321
        %364 = vmatprep.subr.mxu0 0.0
        %365 = vmatpush2.xpose.msra.mxu0 0.0
        %366 = vmatprep.subr.mxu0 0.0
        %367 = vmatpush2.xpose.msra.mxu0 0.0
        %368 = vmatprep.subr.mxu0 0.0
        %369 = vmatpush2.xpose.msra.mxu0 0.0
        %370 = vmatprep.subr.mxu0 0.0
        %371 = vmatpush2.xpose.msra.mxu0 0.0
        %372 = vmatprep.subr.mxu0 0.0
        %373 = vmatpush2.xpose.msra.mxu0 0.0
        %374 = vmatprep.subr.mxu0 0.0
        %375 = vmatpush2.xpose.msra.mxu0 0.0
        %376 = vmatprep.subr.mxu0 0.0
        %377 = vmatpush2.xpose.msra.mxu0 0.0
        %378 = vmatprep.subr.mxu0 0.0
        %379 = vmatpush2.xpose.msra.mxu0 0.0
        %380 = vmatprep.subr.mxu0 0.0
        %381 = vmatpush2.xpose.msra.mxu0 0.0
        %382 = vmatprep.subr.mxu0 0.0
        %383 = vmatpush2.xpose.msra.mxu0 0.0
        %384 = vmatprep.subr.mxu0 0.0
        %385 = vmatpush2.xpose.msra.mxu0 0.0
        %386 = vmatprep.subr.mxu0 0.0
        %387 = vmatpush2.xpose.msra.mxu0 0.0
        %388 = vmatprep.subr.mxu0 0.0
        %389 = vmatpush2.xpose.msra.mxu0 0.0
        %390 = vmatprep.subr.mxu0 0.0
        %391 = vmatpush2.xpose.msra.mxu0 0.0
        %392 = vmatprep.subr.mxu0 0.0
        %393 = vmatpush2.xpose.msra.mxu0 0.0
        %394 = vmatprep.subr.mxu0 0.0
        %395 = vmatpush2.xpose.msra.mxu0 0.0
        %396 = vmatprep.mubr.f32.mxu0 0.0
        %397 = vmatmul.mubr.f32.gmra.mxu0 %v146
        %v398 = vpop.f32.mrf.mxu0
        %v399 = vadd.f32 0.0, %v398
        %v400 = vpop.f32.mrf.mxu0
        %401 = vdwg.mxu0
        %v403 = vsel %vm144, %v227, 0
        %v406 = vsel %vm144, %v313, 0
        %408 = vmatprep.subr.mxu0 0.0
        %409 = vmatpush1.xpose.msra.mxu0 0.0
        %410 = vmatprep.subr.mxu0 0.0
        %411 = vmatpush1.xpose.msra.mxu0 0.0
        %412 = vmatprep.subr.mxu0 0.0
        %413 = vmatpush1.xpose.msra.mxu0 0.0
        %414 = vmatprep.subr.mxu0 0.0
        %415 = vmatpush1.xpose.msra.mxu0 0.0
        %416 = vmatprep.subr.mxu0 0.0
        %417 = vmatpush1.xpose.msra.mxu0 0.0
        %418 = vmatprep.subr.mxu0 0.0
        %419 = vmatpush1.xpose.msra.mxu0 0.0
        %420 = vmatprep.subr.mxu0 0.0
        %421 = vmatpush1.xpose.msra.mxu0 0.0
        %422 = vmatprep.subr.mxu0 0.0
        %423 = vmatpush1.xpose.msra.mxu0 0.0
        %424 = vmatprep.subr.mxu0 0.0
        %425 = vmatpush1.xpose.msra.mxu0 0.0
        %426 = vmatprep.subr.mxu0 0.0
        %427 = vmatpush1.xpose.msra.mxu0 0.0
        %428 = vmatprep.subr.mxu0 0.0
        %429 = vmatpush1.xpose.msra.mxu0 0.0
        %430 = vmatprep.subr.mxu0 0.0
        %431 = vmatpush1.xpose.msra.mxu0 0.0
        %432 = vmatprep.subr.mxu0 0.0
        %433 = vmatpush1.xpose.msra.mxu0 0.0
        %434 = vmatprep.subr.mxu0 0.0
        %435 = vmatpush1.xpose.msra.mxu0 0.0
        %436 = vmatprep.subr.mxu0 0.0
        %437 = vmatpush1.xpose.msra.mxu0 0.0
        %438 = vmatprep.subr.mxu0 0.0
        %439 = vmatpush1.xpose.msra.mxu0 %v406
        %440 = vmatprep.subr.mxu0 0.0
        %441 = vmatpush2.xpose.msra.mxu0 0.0
        %442 = vmatprep.subr.mxu0 0.0
        %443 = vmatpush2.xpose.msra.mxu0 0.0
        %444 = vmatprep.subr.mxu0 0.0
        %445 = vmatpush2.xpose.msra.mxu0 0.0
        %446 = vmatprep.subr.mxu0 0.0
        %447 = vmatpush2.xpose.msra.mxu0 0.0
        %448 = vmatprep.subr.mxu0 0.0
        %449 = vmatpush2.xpose.msra.mxu0 0.0
        %450 = vmatprep.subr.mxu0 0.0
        %451 = vmatpush2.xpose.msra.mxu0 0.0
        %452 = vmatprep.subr.mxu0 0.0
        %453 = vmatpush2.xpose.msra.mxu0 0.0
        %454 = vmatprep.subr.mxu0 0.0
        %455 = vmatpush2.xpose.msra.mxu0 0.0
        %456 = vmatprep.subr.mxu0 0.0
        %457 = vmatpush2.xpose.msra.mxu0 0.0
        %458 = vmatprep.subr.mxu0 0.0
        %459 = vmatpush2.xpose.msra.mxu0 0.0
        %460 = vmatprep.subr.mxu0 0.0
        %461 = vmatpush2.xpose.msra.mxu0 0.0
        %462 = vmatprep.subr.mxu0 0.0
        %463 = vmatpush2.xpose.msra.mxu0 0.0
        %464 = vmatprep.subr.mxu0 0.0
        %465 = vmatpush2.xpose.msra.mxu0 0.0
        %466 = vmatprep.subr.mxu0 0.0
        %467 = vmatpush2.xpose.msra.mxu0 0.0
        %468 = vmatprep.subr.mxu0 0.0
        %469 = vmatpush2.xpose.msra.mxu0 0.0
        %470 = vmatprep.subr.mxu0 0.0
        %471 = vmatpush2.xpose.msra.mxu0 0.0
        %472 = vmatprep.mubr.f32.mxu0 0.0
        %473 = vmatmul.mubr.f32.gmra.mxu0 %v403
        %v474 = vpop.f32.mrf.mxu0
        %v475 = vadd.f32 0.0, %v474
        %v476 = vpop.f32.mrf.mxu0
        %477 = vdwg.mxu0
        %vm478 = vcmask 64512
        %v479 = vsel %vm478, %v475, -inf
        %480 = vmax.xlane.f32.xlu0 %v479
        %v481 = vpop.xlane.xlu0 %480
        %v482 = vsub.f32 %v475, %v481
        %v483 = vmul.f32 %v482, 1.442695
        %v484 = vpow.pop %v483
        %v485 = vsel %vm478, %v484, 0.0
        %486 = vadd.xlane.f32.xlu0 %v485
        %v487 = vpop.xlane.xlu0 %486
        %v489 = vsel %vm478, %v484, 0
        %491 = vmatprep.subr.mxu0 0.0
        %492 = vmatpush1.msra.mxu0 0.0
        %493 = vmatprep.subr.mxu0 0.0
        %494 = vmatpush1.msra.mxu0 0.0
        %495 = vmatprep.subr.mxu0 0.0
        %496 = vmatpush1.msra.mxu0 0.0
        %497 = vmatprep.subr.mxu0 0.0
        %498 = vmatpush1.msra.mxu0 0.0
        %499 = vmatprep.subr.mxu0 0.0
        %500 = vmatpush1.msra.mxu0 0.0
        %501 = vmatprep.subr.mxu0 0.0
        %502 = vmatpush1.msra.mxu0 0.0
        %503 = vmatprep.subr.mxu0 0.0
        %504 = vmatpush1.msra.mxu0 0.0
        %505 = vmatprep.subr.mxu0 0.0
        %506 = vmatpush1.msra.mxu0 0.0
        %507 = vmatprep.subr.mxu0 0.0
        %508 = vmatpush1.msra.mxu0 0.0
        %509 = vmatprep.subr.mxu0 0.0
        %510 = vmatpush1.msra.mxu0 0.0
        %511 = vmatprep.subr.mxu0 0.0
        %512 = vmatpush1.msra.mxu0 0.0
        %513 = vmatprep.subr.mxu0 0.0
        %514 = vmatpush1.msra.mxu0 0.0
        %515 = vmatprep.subr.mxu0 0.0
        %516 = vmatpush1.msra.mxu0 0.0
        %517 = vmatprep.subr.mxu0 0.0
        %518 = vmatpush1.msra.mxu0 0.0
        %519 = vmatprep.subr.mxu0 0.0
        %520 = vmatpush1.msra.mxu0 0.0
        %521 = vmatprep.subr.mxu0 0.0
        %522 = vmatpush1.msra.mxu0 %v399
        %523 = vmatprep.subr.mxu0 0.0
        %524 = vmatpush2.msra.mxu0 0.0
        %525 = vmatprep.subr.mxu0 0.0
        %526 = vmatpush2.msra.mxu0 0.0
        %527 = vmatprep.subr.mxu0 0.0
        %528 = vmatpush2.msra.mxu0 0.0
        %529 = vmatprep.subr.mxu0 0.0
        %530 = vmatpush2.msra.mxu0 0.0
        %531 = vmatprep.subr.mxu0 0.0
        %532 = vmatpush2.msra.mxu0 0.0
        %533 = vmatprep.subr.mxu0 0.0
        %534 = vmatpush2.msra.mxu0 0.0
        %535 = vmatprep.subr.mxu0 0.0
        %536 = vmatpush2.msra.mxu0 0.0
        %537 = vmatprep.subr.mxu0 0.0
        %538 = vmatpush2.msra.mxu0 0.0
        %539 = vmatprep.subr.mxu0 0.0
        %540 = vmatpush2.msra.mxu0 0.0
        %541 = vmatprep.subr.mxu0 0.0
        %542 = vmatpush2.msra.mxu0 0.0
        %543 = vmatprep.subr.mxu0 0.0
        %544 = vmatpush2.msra.mxu0 0.0
        %545 = vmatprep.subr.mxu0 0.0
        %546 = vmatpush2.msra.mxu0 0.0
        %547 = vmatprep.subr.mxu0 0.0
        %548 = vmatpush2.msra.mxu0 0.0
        %549 = vmatprep.subr.mxu0 0.0
        %550 = vmatpush2.msra.mxu0 0.0
        %551 = vmatprep.subr.mxu0 0.0
        %552 = vmatpush2.msra.mxu0 0.0
        %553 = vmatprep.subr.mxu0 0.0
        %554 = vmatpush2.msra.mxu0 0.0
        %555 = vmatprep.mubr.f32.mxu0 0.0
        %556 = vmatmul.mubr.f32.gmra.mxu0 %v489
        %v557 = vpop.f32.mrf.mxu0
        %v558 = vadd.f32 0.0, %v557
        %v559 = vpop.f32.mrf.mxu0
        %560 = vdwg.mxu0
        %v561 = vrcp.pop %v487
        %v562 = vmul.f32 %v558, %v561
        %563 = vst.msk [vmem:[%s134] sm:$0xff] %vm144, %v562
        %s564 = sand.u32 %s71, 1
        %s565 = scalar_lea.sflag [#allocation3], %s564
        %s566 = sand.u32 %s71, 1
        %s567 = smul.addr %s566, 8
        %s568 = scalar_lea.vmem [#allocation2], %s567
        // Predicated region
        $region29: #{tpu_custom_call.1} parent=27 // pred_check
          %p569 = pneg %p81
        $region30: #{tpu_custom_call.1} parent=27 // pred_check_branch
          %571 = sbr.rel (%p569) target = $region32
        $region31: #{tpu_custom_call.1} parent=27 // pred_region
          %s573 = ssub.s32 128, 128
          %574 = vsyncadd %s565, %s573
          %s575 = smul.addr %s16, 128
          %s576 = scalar_lea.hbm %s2, %s575
          %s578 = sshll.u32 %s568, 4
          %s579 = int_to_ptr.vmem [resolvable:$true] %s578
          %581 = dma.vmem_to_hbm [thread:$0]  %s579, 128, %s576, %s565
        $region32: #{tpu_custom_call.1} parent=27 // pred_fallthru
          _
      $region28: #{tpu_custom_call.1} parent=5 // pred_fallthru
        _
      %p582 = scmp.le.s32.totalorder 2, %s11
      // Predicated region
      $region33: #{tpu_custom_call.1} parent=5 // pred_check
        %p583 = pneg %p582
      $region34: #{tpu_custom_call.1} parent=5 // pred_check_branch
        %585 = sbr.rel (%p583) target = $region36
      $region35: #{tpu_custom_call.1} parent=5 // pred_region
        %s586 = ssub.s32 %s11, 2
        // Predicated region
        $region37: #{tpu_custom_call.1} parent=35 // pred_check
          %p587 = pneg %p87
        $region38: #{tpu_custom_call.1} parent=35 // pred_check_branch
          %589 = sbr.rel (%p587) target = $region40
        $region39: #{tpu_custom_call.1} parent=35 // pred_region
          %s590 = sand.u32 %s72, 1
          %s591 = scalar_lea.sflag [#allocation3], %s590
          %s592 = sand.u32 %s72, 1
          %s593 = smul.addr %s592, 8
          %s594 = scalar_lea.vmem [#allocation2], %s593
          %595 = dma.done %s591, 128
        $region40: #{tpu_custom_call.1} parent=35 // pred_fallthru
          _
      $region36: #{tpu_custom_call.1} parent=5 // pred_fallthru
        _
    $region6: #{tpu_custom_call.1} parent=1 // loop_footer
      %s15 = sadd.s32 1, %s11
    $region7: #{tpu_custom_call.1} parent=1 // loop_footer_branch
      %10 = sbr.rel target = $region3
    $region8: #{tpu_custom_call.1} parent=1 // loop_exit
      _
    %596 = vsyncpa [#allocation3], 1
    %s597 = scalar_lea.sflag [#allocation3], 1
    %598 = vsyncpa %s597, 1

</llo_original>
